<compile_context>
chip_gen: v6e
topology: v6e:2x2x1
jax: 0.10.0
libtpu: 0.0.40
codegen_flags: <defaults>
</compile_context>

<pallas_src>
import numpy as np

import jax
import jax.numpy as jnp
from jax.experimental import pallas as pl
from jax.experimental.pallas import tpu as pltpu


# ----------------------------------------------------------------------------
# Cell description (one concrete DARTS normal cell).
# ----------------------------------------------------------------------------
GENOTYPE = [
    ("sep_conv_3x3", 2, 0),
    ("skip_connect", 2, 1),
    ("sep_conv_3x3", 3, 0),
    ("skip_connect", 3, 2),
    ("avg_pool_3x3", 4, 1),
    ("skip_connect", 4, 2),
    ("max_pool_3x3", 5, 3),
    ("skip_connect", 5, 4),
]
STEPS = 4
CONCAT = [2, 3, 4, 5]


def _compile_groups(genotype, steps):
    """Mirror Cell._compile(): group edge input indices per intermediate node."""
    op_names, indices_out, indices_inp = zip(*genotype)
    out_inp_list, temp_list, idx_cmp = [], [], 2
    for i in range(len(op_names)):
        if indices_out[i] == idx_cmp:
            temp_list.append(indices_inp[i])
        elif indices_out[i] > idx_cmp:
            out_inp_list.append(temp_list.copy())
            temp_list = [indices_inp[i]]
            idx_cmp += 1
        else:
            raise Exception("input index should not less than idx_cmp")
    out_inp_list.append(temp_list.copy())
    assert len(out_inp_list) == steps
    return list(op_names), out_inp_list


# ----------------------------------------------------------------------------
# pltpu.roll direction probe (+1 means pltpu.roll matches np.roll:
# out[i] = in[i - shift]).
# ----------------------------------------------------------------------------
def detect_roll_sign():
    def probe(x_ref, o_ref):
        o_ref[...] = pltpu.roll(x_ref[...], 1, axis=1)

    x = jax.lax.broadcasted_iota(jnp.float32, (8, 128), 1)
    y = pl.pallas_call(
        probe, out_shape=jax.ShapeDtypeStruct((8, 128), jnp.float32))(x)
    v = float(y[0, 1])
    assert v in (0.0, 2.0), f"unexpected pltpu.roll semantics: {v}"
    return 1 if v == 0.0 else -1


def _mod(x, m):
    """Static-modulus remainder; uses bit-AND when m is a power of two."""
    if m & (m - 1) == 0:
        return x & (m - 1)
    return x % m


# ----------------------------------------------------------------------------
# Fused cell kernel: whole batch, whole cell, one grid step.
# ----------------------------------------------------------------------------
def _make_cell_kernel(b, h, w, c, edges, out_inp_list, concat,
                      sep_edges, sep_input_idx, roll_sign):
    rows = b * h
    wc = w * c

    def kernel(s0_ref, s1_ref, wpre_ref, sbpre_ref, dw1_ref, wpw1_ref,
               sbpw1_ref, dw2_ref, wpw2_ref, sbpw2_ref, inv_ref, out_ref):
        f32 = jnp.float32
        bf16 = jnp.bfloat16

        def masks(lanes):
            # Per-image / per-slot boundary masks (True where neighbour exists).
            lane = _mod(jax.lax.broadcasted_iota(jnp.int32, (rows, lanes), 1), wc)
            row = _mod(jax.lax.broadcasted_iota(jnp.int32, (rows, lanes), 0), h)
            return (lane >= c,            # w-1 exists
                    lane < wc - c,        # w+1 exists
                    row >= 1,             # h-1 exists
                    row <= h - 2)         # h+1 exists

        m1 = masks(wc)        # 128-lane (single-state) tiles
        m2 = masks(2 * wc)    # 256-lane (paired sep_conv) tiles

        def shift(x, k, axis):
            """out[i] = x[i - k] (cyclic) along `axis`; k is a static int."""
            size = x.shape[axis]
            return pltpu.roll(x, (roll_sign * k) % size, axis=axis)

        def matmul_affine(x, w_ref, sb_ref):
            # bf16 MXU operands, f32 accumulation, then folded inference BN.
            y = jnp.dot(x.astype(bf16), w_ref[...], preferred_element_type=f32)
            return y * sb_ref[pl.ds(0, 1), :] + sb_ref[pl.ds(1, 1), :]

        def dw3x3_from_relu(xr, dw_row_fns, msk):
            """Depthwise 3x3 (stride 1, zero pad) on already-ReLU'd xr.

            Taps are generated once and immediately FMA'd into every
            accumulator (one per weight set) -> shared-stencil CSE for the two
            sep_conv edges, and bounded live-vreg pressure.
            """
            has_l, has_r, has_u, has_d = msk
            accs = [None] * len(dw_row_fns)
            for dj, lmask in ((-1, has_l), (0, None), (1, has_r)):
                xw = xr if dj == 0 else jnp.where(
                    lmask, shift(xr, -dj * c, axis=1), 0.0)
                for di, rmask in ((-1, has_u), (0, None), (1, has_d)):
                    tap = xw if di == 0 else jnp.where(
                        rmask, shift(xw, -di, axis=0), 0.0)
                    k = (di + 1) * 3 + (dj + 1)
                    for t, row_fn in enumerate(dw_row_fns):
                        contrib = tap * row_fn(k)
                        accs[t] = contrib if accs[t] is None else accs[t] + contrib
            return accs

        def pool3x3(x, op, fill):
            # Separable 3x3 pool: 1x3 lane pass then 3x1 sublane pass (4 rolls).
            has_l, has_r, has_u, has_d = m1
            hl = jnp.where(has_l, shift(x, c, axis=1), fill)
            hr = jnp.where(has_r, shift(x, -c, axis=1), fill)
            hx = op(op(x, hl), hr)
            vu = jnp.where(has_u, shift(hx, 1, axis=0), fill)
            vd = jnp.where(has_d, shift(hx, -1, axis=0), fill)
            return op(op(hx, vu), vd)

        # ---- preprocess0 + preprocess1: ReLU -> one 256-lane block-diagonal
        #      1x1 conv matmul -> folded BN, then split into the two states.
        x01 = jnp.concatenate(
            [jnp.maximum(s0_ref[...], 0.0), jnp.maximum(s1_ref[...], 0.0)],
            axis=-1)
        s01 = matmul_affine(x01, wpre_ref, sbpre_ref)      # (rows, 2*wc)
        states = [s01[:, :wc], s01[:, wc:]]

        # ---- both sep_conv_3x3 edges, fused (they share input state):
        #      SepConv(C,C,3,1,1) = [ReLU, dw3x3, pw1x1, BN] x 2 (BN folded).
        xr = jnp.maximum(states[sep_input_idx], 0.0)
        acc_a, acc_b = dw3x3_from_relu(
            xr,
            [lambda k: dw1_ref[0, pl.ds(k, 1), :],
             lambda k: dw1_ref[1, pl.ds(k, 1), :]],
            m1)
        y = jnp.concatenate([acc_a, acc_b], axis=-1)       # (rows, 2*wc)
        y = matmul_affine(y, wpw1_ref, sbpw1_ref)          # paired pw1 + BN
        yr = jnp.maximum(y, 0.0)
        (y2,) = dw3x3_from_relu(
            yr, [lambda k: dw2_ref[pl.ds(k, 1), :]], m2)   # paired 2nd dw3x3
        y2 = matmul_affine(y2, wpw2_ref, sbpw2_ref)        # paired pw2 + BN
        sep_out = {sep_edges[0]: y2[:, :wc], sep_edges[1]: y2[:, wc:]}

        # ---- node dataflow (drop_path is a no-op: search=True / drop_prob=0).
        # Pools: MixedOp wraps them with BatchNorm2d(C, affine=False); with the
        # deterministic running stats used here (mean=0, var=1) that BN equals
        # identity up to 1/sqrt(1+1e-5) (~5e-6 relative), which we drop.
        eidx = 0
        for inps in out_inp_list:
            acc = None
            for inp in inps:
                name = edges[eidx][0]
                xv = states[inp]
                if name == "skip_connect":
                    hval = xv
                elif name == "sep_conv_3x3":
                    hval = sep_out[eidx]
                elif name == "avg_pool_3x3":
                    hval = pool3x3(xv, lambda p, q: p + q, 0.0) * inv_ref[...]
                elif name == "max_pool_3x3":
                    hval = pool3x3(xv, jnp.maximum, -jnp.inf)
                else:
                    # TODO(synk): other DARTS primitives (dil_conv, 5x5, 'none')
                    # are not wired for this fixed genotype.
                    raise NotImplementedError(name)
                acc = hval if acc is None else acc + hval   # node sum, in-register
                eidx += 1
            states.append(acc)

        # ---- channel concat: single lane-dense (rows, m*wc) store.
        out_ref[...] = jnp.concatenate([states[nd] for nd in concat], axis=-1)

    return kernel


def make_forward(packed, inv_rows, n, h, w, c, c_pp, c_p,
                 edges, out_inp_list, concat, sep_edges, sep_input_idx,
                 roll_sign):
    rows = n * h
    wc = w * c
    m = len(concat)
    kernel = _make_cell_kernel(n, h, w, c, edges, out_inp_list, concat,
                               sep_edges, sep_input_idx, roll_sign)

    def full(shape):
        return pl.BlockSpec(shape, lambda i, _s=shape: (0,) * len(_s))

    cell_call = pl.pallas_call(
        kernel,
        out_shape=jax.ShapeDtypeStruct((rows, m * wc), jnp.float32),
        grid=(1,),   # whole batch folded into the matmul M dimension
        in_specs=[
            full((rows, w * c_pp)),            # s0 (lane-dense)
            full((rows, w * c_p)),             # s1 (lane-dense)
            full((w * (c_pp + c_p), 2 * wc)),  # paired preprocess weights (bf16)
            full((2, 2 * wc)),                 # paired preprocess BN scale/bias
            full((2, 9, wc)),                  # dw stage-1 weights (slot a, b)
            full((2 * wc, 2 * wc)),            # paired pw1 weights (bf16)
            full((2, 2 * wc)),                 # paired pw1 BN scale/bias
            full((9, 2 * wc)),                 # dw stage-2 weights (lane-paired)
            full((2 * wc, 2 * wc)),            # paired pw2 weights (bf16)
            full((2, 2 * wc)),                 # paired pw2 BN scale/bias
            full((rows, wc)),                  # avg-pool 1/count map
        ],
        out_specs=full((rows, m * wc)),
        compiler_params=pltpu.CompilerParams(
            dimension_semantics=("arbitrary",)),
    )

    def forward(s0_nchw, s1_nchw):
        # NCHW at the interface (PyTorch); lane-dense (N*H, W*C) inside.
        # TODO(synk): keeping the lane-dense layout as the inter-cell contract
        # would drop these relayout transposes entirely.
        s0 = jnp.transpose(s0_nchw, (0, 2, 3, 1)).reshape(rows, w * c_pp)
        s1 = jnp.transpose(s1_nchw, (0, 2, 3, 1)).reshape(rows, w * c_p)
        out = cell_call(s0, s1, packed["w_pre"], packed["sb_pre"],
                        packed["dw1"], packed["w_pw1"], packed["sb_pw1"],
                        packed["dw2"], packed["w_pw2"], packed["sb_pw2"],
                        inv_rows)
        out = out.reshape(n, h, m, w, c)
        out = jnp.transpose(out, (0, 2, 4, 1, 3)).reshape(n, m * c, h, w)
        return out

    return jax.jit(forward)


# ----------------------------------------------------------------------------
# Parameter construction (deterministic, PRNGKey(0)-derived) and packing.
# ----------------------------------------------------------------------------
def _bn_fold(key, c):
    """Inference-mode BatchNorm folded to per-channel (scale, bias)."""
    k1, k2, k3, k4 = jax.random.split(key, 4)
    gamma = jax.random.uniform(k1, (c,), jnp.float32, 0.8, 1.2)
    beta = 0.1 * jax.random.normal(k2, (c,), jnp.float32)
    mean = 0.1 * jax.random.normal(k3, (c,), jnp.float32)
    var = jax.random.uniform(k4, (c,), jnp.float32, 0.5, 1.5)
    scale = gamma / jnp.sqrt(var + 1e-5)
    bias = beta - mean * scale
    return scale, bias


def build_params(key, c_pp, c_p, c, op_names):
    """Deterministic parameters in natural (PyTorch-like) shapes."""
    n_sep = sum(1 for nm in op_names if nm == "sep_conv_3x3")
    keys = iter(jax.random.split(key, 4 + 6 * n_sep))
    params = {
        "w_pre0": 0.1 * jax.random.normal(next(keys), (c_pp, c), jnp.float32),
        "sb_pre0": _bn_fold(next(keys), c),
        "w_pre1": 0.1 * jax.random.normal(next(keys), (c_p, c), jnp.float32),
        "sb_pre1": _bn_fold(next(keys), c),
        "sep": [],
    }
    for _ in range(n_sep):
        p = {}
        for st in (1, 2):
            p[f"dw{st}"] = 0.1 * jax.random.normal(next(keys), (3, 3, c), jnp.float32)
            p[f"pw{st}"] = 0.1 * jax.random.normal(next(keys), (c, c), jnp.float32)
            p[f"s{st}"], p[f"b{st}"] = _bn_fold(next(keys), c)
        params["sep"].append(p)
    return params


def pack_params(params, c, w):
    """Repack parameters into the fused kernel's lane-dense paired layout."""
    eye_w = jnp.eye(w, dtype=jnp.float32)

    def tile_c(v):                      # (c,) -> (w*c,): lane q = w_idx*c + ch
        return jnp.tile(v, w)

    def blkdiag(a, b):
        ra, ca = a.shape
        rb, cb = b.shape
        out = jnp.zeros((ra + rb, ca + cb), jnp.float32)
        out = out.at[:ra, :ca].set(a)
        out = out.at[ra:, ca:].set(b)
        return out

    def sb_pair(sa, sb):                # ((scale,bias),(scale,bias)) -> (2, 2*wc)
        return jnp.stack([jnp.concatenate([tile_c(sa[0]), tile_c(sb[0])]),
                          jnp.concatenate([tile_c(sa[1]), tile_c(sb[1])])])

    def dw_lane(dw):                    # (3,3,c) -> (9, w*c)
        return jnp.tile(dw.reshape(9, c), (1, w))

    pa, pb = params["sep"]
    return {
        # bf16 weights: MXU-native operands; accumulation stays f32 in-kernel.
        "w_pre": blkdiag(jnp.kron(eye_w, params["w_pre0"]),
                         jnp.kron(eye_w, params["w_pre1"])).astype(jnp.bfloat16),
        "sb_pre": sb_pair(params["sb_pre0"], params["sb_pre1"]),
        "dw1": jnp.stack([dw_lane(pa["dw1"]), dw_lane(pb["dw1"])]),
        "w_pw1": blkdiag(jnp.kron(eye_w, pa["pw1"]),
                         jnp.kron(eye_w, pb["pw1"])).astype(jnp.bfloat16),
        "sb_pw1": sb_pair((pa["s1"], pa["b1"]), (pb["s1"], pb["b1"])),
        "dw2": jnp.concatenate([dw_lane(pa["dw2"]), dw_lane(pb["dw2"])], axis=-1),
        "w_pw2": blkdiag(jnp.kron(eye_w, pa["pw2"]),
                         jnp.kron(eye_w, pb["pw2"])).astype(jnp.bfloat16),
        "sb_pw2": sb_pair((pa["s2"], pa["b2"]), (pb["s2"], pb["b2"])),
    }


def make_inv_cnt(h, w, c):
    """1/window-size per spatial position for count_include_pad=False avg pool."""
    rcnt = 3.0 - (jnp.arange(h) == 0) - (jnp.arange(h) == h - 1)
    ccnt = 3.0 - (jnp.arange(w) == 0) - (jnp.arange(w) == w - 1)
    cnt = rcnt[:, None, None] * ccnt[None, :, None]     # (h, w, 1)
    inv = jnp.broadcast_to(1.0 / cnt, (h, w, c))
    return inv.reshape(h, w * c).astype(jnp.float32)


# ----------------------------------------------------------------------------
# Pure-JAX reference (NHWC, f32) for a numerical self-check.
# ----------------------------------------------------------------------------
def ref_forward(params, s0_nchw, s1_nchw, edges, out_inp_list, concat):
    hp = jax.lax.Precision.HIGHEST

    def conv1x1(x, wmat):
        return jnp.einsum("nhwc,cd->nhwd", x, wmat, precision=hp)

    def relu_conv_bn(x, wmat, sb):
        return conv1x1(jnp.maximum(x, 0.0), wmat) * sb[0] + sb[1]

    def relu_dw3x3(x, dw):
        n, h, w, c = x.shape
        xp = jnp.pad(jnp.maximum(x, 0.0), ((0, 0), (1, 1), (1, 1), (0, 0)))
        acc = jnp.zeros_like(x)
        for a in range(3):
            for b in range(3):
                acc = acc + xp[:, a:a + h, b:b + w, :] * dw[a, b]
        return acc

    def sep_conv(x, p):
        y = conv1x1(relu_dw3x3(x, p["dw1"]), p["pw1"]) * p["s1"] + p["b1"]
        y = conv1x1(relu_dw3x3(y, p["dw2"]), p["pw2"]) * p["s2"] + p["b2"]
        return y

    def max_pool(x):
        n, h, w, c = x.shape
        xp = jnp.pad(x, ((0, 0), (1, 1), (1, 1), (0, 0)),
                     constant_values=-jnp.inf)
        acc = None
        for a in range(3):
            for b in range(3):
                t = xp[:, a:a + h, b:b + w, :]
                acc = t if acc is None else jnp.maximum(acc, t)
        return acc

    def avg_pool(x):
        n, h, w, c = x.shape
        xp = jnp.pad(x, ((0, 0), (1, 1), (1, 1), (0, 0)))
        acc = jnp.zeros_like(x)
        for a in range(3):
            for b in range(3):
                acc = acc + xp[:, a:a + h, b:b + w, :]
        rcnt = 3.0 - (jnp.arange(h) == 0) - (jnp.arange(h) == h - 1)
        ccnt = 3.0 - (jnp.arange(w) == 0) - (jnp.arange(w) == w - 1)
        cnt = rcnt[:, None] * ccnt[None, :]
        return acc / cnt[None, :, :, None]

    s0 = jnp.transpose(s0_nchw, (0, 2, 3, 1))
    s1 = jnp.transpose(s1_nchw, (0, 2, 3, 1))
    s0 = relu_conv_bn(s0, params["w_pre0"], params["sb_pre0"])
    s1 = relu_conv_bn(s1, params["w_pre1"], params["sb_pre1"])

    states = [s0, s1]
    eidx = 0
    for inps in out_inp_list:
        acc = None
        for inp in inps:
            name, slot = edges[eidx]
            x = states[inp]
            if name == "skip_connect":
                hval = x
            elif name == "sep_conv_3x3":
                hval = sep_conv(x, params["sep"][slot])
            elif name == "avg_pool_3x3":
                hval = avg_pool(x)
            elif name == "max_pool_3x3":
                hval = max_pool(x)
            else:
                raise NotImplementedError(name)
            acc = hval if acc is None else acc + hval
            eidx += 1
        states.append(acc)

    out = jnp.concatenate([states[i] for i in concat], axis=-1)
    return jnp.transpose(out, (0, 3, 1, 2))


# ----------------------------------------------------------------------------
# Main
# ----------------------------------------------------------------------------
if __name__ == "__main__":
    N, C_PREV_PREV, C_PREV, C, H, W = 2, 8, 8, 8, 16, 16

    root = jax.random.PRNGKey(0)
    k_params, k_s0, k_s1 = jax.random.split(root, 3)

    op_names, out_inp_list = _compile_groups(GENOTYPE, STEPS)
    edges, sep_slot = [], 0
    for nm in op_names:
        if nm == "sep_conv_3x3":
            edges.append((nm, sep_slot))
            sep_slot += 1
        else:
            edges.append((nm, None))

    flat_inps = [inp for grp in out_inp_list for inp in grp]
    sep_edges = [i for i, (nm, _) in enumerate(edges) if nm == "sep_conv_3x3"]
    assert len(sep_edges) == 2, "fused path expects exactly two sep_conv_3x3 edges"
    sep_input_idx = flat_inps[sep_edges[0]]
    assert flat_inps[sep_edges[1]] == sep_input_idx and sep_input_idx < 2, (
        "fused sep_conv pair must share a preprocessed input state")
    # TODO(synk): genotypes whose sep_conv edges read different / later states
    # need a per-edge (non-fused) sep_conv path.

    params = build_params(k_params, C_PREV_PREV, C_PREV, C, op_names)
    packed = pack_params(params, C, W)
    inv_rows = jnp.tile(make_inv_cnt(H, W, C), (N, 1))     # (N*H, W*C)
    roll_sign = detect_roll_sign()

    cell = make_forward(packed, inv_rows, N, H, W, C, C_PREV_PREV, C_PREV,
                        edges, out_inp_list, CONCAT, sep_edges, sep_input_idx,
                        roll_sign)

    s0 = jax.random.normal(k_s0, (N, C_PREV_PREV, H, W), jnp.float32)
    s1 = jax.random.normal(k_s1, (N, C_PREV, H, W), jnp.float32)

    out = cell(s0, s1)
    jax.block_until_ready(out)

    assert out.shape == (N, len(CONCAT) * C, H, W), out.shape
    assert bool(jnp.all(jnp.isfinite(out)))

    # Numerical check against a pure-JAX f32 reference of the same cell
    # (kernel uses bf16 matmul operands; tolerance has ample headroom).
    ref = ref_forward(params, s0, s1, edges, out_inp_list, CONCAT)
    np.testing.assert_allclose(np.asarray(out), np.asarray(ref),
                               rtol=2e-2, atol=2e-2)

    print("KERNEL_OK")
</pallas_src>

<mosaic_0001>
module attributes {stable_mosaic.version = 11 : i64} {
  func.func @probe(%arg0: memref<8x128xf32, #tpu.memory_space<vmem>>, %arg1: memref<8x128xf32, #tpu.memory_space<vmem>>) attributes {dimension_semantics = [], scalar_prefetch = 0 : i64, scratch_operands = 0 : i64, tpu.core_type = #tpu.core_type<tc>} {
    %c0 = arith.constant 0 : index
    %c0_0 = arith.constant 0 : index
    %0 = vector.load %arg0[%c0, %c0_0] : memref<8x128xf32, #tpu.memory_space<vmem>>, vector<8x128xf32>
    %c1_i32 = arith.constant 1 : i32
    %1 = tpu.dynamic_rotate %0 by %c1_i32 dim 1 : vector<8x128xf32>, i32 -> vector<8x128xf32>
    %c0_1 = arith.constant 0 : index
    %c0_2 = arith.constant 0 : index
    %2 = vector.load %arg1[%c0_1, %c0_2] : memref<8x128xf32, #tpu.memory_space<vmem>>, vector<8x128xf32>
    tpu.vector_store %arg1[%c0_1, %c0_2], %1 {strides = array<i32>} : memref<8x128xf32, #tpu.memory_space<vmem>>, vector<8x128xf32>,
    return
  }
}

</mosaic_0001>

<llo_original>
// kernel: tpu_custom_call.1
$region0: #{tpu_custom_call.1}
  #allocation0 [shape = 'u32[]', space=smem, size = 0x4, offset = 0x4, fixed_abs, tag = 'smem constant byte address 0x4 - core index']
  #allocation1 [shape = 'u32[144,128]{1,0:T(1,128)}', space=vmem, size = 0x12000, scoped, tag = 'internal scratch']
  %s0 = inlined_call_operand.hbm [shape: f32[8,128], index: 0, kind: input, shape index: {}]
  %s1 = inlined_call_operand.hbm [shape: f32[8,128], index: 1, kind: output, shape index: {}]
  %s2 = sld [smem:[#allocation0]]
  $region18: #{tpu_custom_call.1} parent=0
    _
  %s4 = ssub.s32 1, %s2
  %s5 = scalar_select 0, %s4, %s2
  $region1: #{tpu_custom_call.1} parent=0
    #allocation2 [shape = 'u8[4096]{0}', space=vmem, size = 0x1000, scoped, tag = 'input window, operand 0, single buffered']
    #allocation3 [shape = 's32[1]{0}', space=sflag, size = 0x4, scoped, tag = 'scoped memory for tpu_custom_call.1']
    #allocation4 [shape = 's32[1]{0}', space=sflag, size = 0x4, scoped, tag = 'scoped memory for tpu_custom_call.1']
    #allocation5 [shape = 'u8[4096]{0}', space=vmem, size = 0x1000, scoped, tag = 'output window, operand 0, single buffered']
    %6 = vsyncpa [#allocation3], 0
    %7 = vsyncpa [#allocation4], 0
    // Predicated region
    $region2: #{tpu_custom_call.1} parent=1 // pred_check
      _
    $region3: #{tpu_custom_call.1} parent=1 // pred_check_branch
      %9 = sbr.rel (0) target = $region5
    $region4: #{tpu_custom_call.1} parent=1 // pred_region
      %s11 = ssub.s32 128, 128
      %12 = vsyncadd [#allocation3], %s11
      %s14 = sshll.u32 [#allocation2], 4
      %s15 = int_to_ptr.vmem [resolvable:$true] %s14
      %17 = dma.hbm_to_vmem [thread:$0]  %s0, 128, %s15, [#allocation3]
    $region5: #{tpu_custom_call.1} parent=1 // pred_fallthru
      _
    // Predicated region
    $region6: #{tpu_custom_call.1} parent=1 // pred_check
      _
    $region7: #{tpu_custom_call.1} parent=1 // pred_check_branch
      %19 = sbr.rel (0) target = $region9
    $region8: #{tpu_custom_call.1} parent=1 // pred_region
      %20 = dma.done [#allocation3], 128
    $region9: #{tpu_custom_call.1} parent=1 // pred_fallthru
      _
    %v21 = vld [vmem:[#allocation2] sm:$0xff]
    %22 = vrot.lane.b32.xlu0 %v21, 1
    %v23 = vpop.permute.xlu0 %22
    %24 = vst [vmem:[#allocation5] sm:$0xff] %v23
    // Predicated region
    $region10: #{tpu_custom_call.1} parent=1 // pred_check
      _
    $region11: #{tpu_custom_call.1} parent=1 // pred_check_branch
      %26 = sbr.rel (0) target = $region13
    $region12: #{tpu_custom_call.1} parent=1 // pred_region
      %s28 = ssub.s32 128, 128
      %29 = vsyncadd [#allocation4], %s28
      %s31 = sshll.u32 [#allocation5], 4
      %s32 = int_to_ptr.vmem [resolvable:$true] %s31
      %34 = dma.vmem_to_hbm [thread:$0]  %s32, 128, %s1, [#allocation4]
    $region13: #{tpu_custom_call.1} parent=1 // pred_fallthru
      _
    // Predicated region
    $region14: #{tpu_custom_call.1} parent=1 // pred_check
      _
    $region15: #{tpu_custom_call.1} parent=1 // pred_check_branch
      %36 = sbr.rel (0) target = $region17
    $region16: #{tpu_custom_call.1} parent=1 // pred_region
      %37 = dma.done [#allocation4], 128
    $region17: #{tpu_custom_call.1} parent=1 // pred_fallthru
      _
    %38 = vsyncpa [#allocation3], 1
    %39 = vsyncpa [#allocation4], 1

</llo_original>
